<compile_context>
chip_gen: v7x
topology: tpu7x:2x2x1
jax: 0.10.0
libtpu: 0.0.40
codegen_flags: <defaults>
</compile_context>

<pallas_src>
import functools

import jax
import jax.numpy as jnp
import numpy as np
from jax.experimental import pallas as pl
from jax.experimental.pallas import tpu as pltpu


def _round_up(x, m):
    return (x + m - 1) // m * m


def _tpu_kind():
    try:
        dev = jax.devices()[0]
        return dev.device_kind.lower() if dev.platform == "tpu" else ""
    except Exception:
        return ""


def _choose_block_n(n, multi_core):
    """Lane-dense batch tile (multiple of 128).

    Single-TC chips (v5e / v6e): fewest grid steps -> one tile up to the cap.
    Multi-TC chips (v4 / v5p / v7x): split into an even number of tiles so the
    'parallel' grid axis load-balances across the TensorCores.
    """
    cap = 8192  # ~1.2 MiB of double-buffered VMEM at f32 -> far under limits
    n128 = _round_up(max(n, 1), 128)
    if not multi_core:
        return min(n128, cap)
    steps = 2
    while _round_up(-(-n128 // steps), 128) > cap:
        steps += 2
    return _round_up(-(-n128 // steps), 128)


def _pinn_kernel(x_ref, w_in_ref, b_in_ref,
                 w_h_ref, b_h_ref,
                 w_out_ref, b_out_ref,
                 o_ref,
                 *, num_hidden_layers, activation, mm_dtype, act_dtype):
    # Feature-major math: every tensor has the batch on the lane (last) axis.
    if activation == "tanh":
        act = jnp.tanh
    else:
        act = lambda v: jnp.maximum(v, jnp.asarray(0, v.dtype))

    # input layer: (hidden, in) @ (in, bn) -> f32 (hidden, bn)
    x = x_ref[...].astype(mm_dtype)
    h = jnp.dot(w_in_ref[...], x, preferred_element_type=jnp.float32)
    h = act((h + b_in_ref[...]).astype(act_dtype))

    # hidden layers (static unroll; num_hidden_layers known at trace time)
    for l in range(num_hidden_layers):
        h = jnp.dot(w_h_ref[l], h.astype(mm_dtype),
                    preferred_element_type=jnp.float32)
        h = act((h + b_h_ref[l]).astype(act_dtype))

    # output layer: (out, hidden) @ (hidden, bn) -> (out, bn), stored f32
    y = jnp.dot(w_out_ref[...], h.astype(mm_dtype),
                preferred_element_type=jnp.float32)
    o_ref[...] = (y + b_out_ref[...]).astype(o_ref.dtype)


def pinn_forward(x, params, *, lb=None, ub=None, out_scale=None,
                 activation="tanh", precision="bf16", block_n=None):
    """Pallas-backed PINN forward.  x: (N, input_dim) f32 -> (N, output_dim).

    precision="bf16": bf16 MXU operands (+ bf16 activations on bf16-EUP chips).
    precision="f32" : exact fallback matching the f32 reference tightly.
    """
    if activation not in ("tanh", "relu"):
        raise ValueError("activation must be 'tanh' or 'relu'")
    if precision not in ("bf16", "f32"):
        raise ValueError("precision must be 'bf16' or 'f32'")

    w_in, b_in, w_h, b_h, w_out, b_out = params
    N, input_dim = x.shape
    hidden_dim = w_in.shape[0]
    output_dim = w_out.shape[0]
    L = w_h.shape[0]

    # ---- affine folds (no per-block VPU work left in the kernel) ----------
    # normalization x' = 2*(x - lb)/(ub - lb) - 1 folded into the first layer
    if lb is not None and ub is not None:
        lb = jnp.asarray(lb, jnp.float32).reshape(1, input_dim)
        ub = jnp.asarray(ub, jnp.float32).reshape(1, input_dim)
        s = 2.0 / (ub - lb)                        # (1, in)
        t = -2.0 * lb / (ub - lb) - 1.0            # (1, in)
        b_in = b_in + w_in @ t.reshape(input_dim, 1)
        w_in = w_in * s
    # out_scale is a static config scalar; mirror the module's "if out_scale:"
    # (skip on None / 0) without Python-truthiness surprises on arrays.
    if out_scale is not None and out_scale != 0:
        w_out = w_out / out_scale
        b_out = b_out / out_scale

    # ---- device-aware dtype / tiling policy -------------------------------
    kind = _tpu_kind()
    multi_core = any(t in kind for t in ("v4", "v5p", "v7", "7x"))
    bf16_eup = any(t in kind for t in ("v6", "v7", "7x"))

    mm_dtype = jnp.bfloat16 if precision == "bf16" else jnp.float32
    act_dtype = jnp.bfloat16 if (precision == "bf16" and bf16_eup) else jnp.float32

    # bf16 matmul operands: weights cast once here; biases stay f32 and add
    # onto the f32 MXU accumulation.
    w_in = w_in.astype(mm_dtype)
    w_h = w_h.astype(mm_dtype)
    w_out = w_out.astype(mm_dtype)
    b_in = b_in.astype(jnp.float32)
    b_h = b_h.astype(jnp.float32)
    b_out = b_out.astype(jnp.float32)

    # ---- lane-dense feature-major layout: batch -> 128-lane axis ----------
    if block_n is None:
        block_n = _choose_block_n(N, multi_core)
    n_pad = _round_up(N, block_n)
    if n_pad != N:
        x = jnp.pad(x, ((0, n_pad - N), (0, 0)))
    x_t = x.T                                       # (input_dim, n_pad), f32

    kernel = functools.partial(_pinn_kernel,
                               num_hidden_layers=L,
                               activation=activation,
                               mm_dtype=mm_dtype,
                               act_dtype=act_dtype)

    grid = (n_pad // block_n,)
    # x^T / y^T are tiled over the batch (lanes); weights/biases are tiny,
    # constant-index (not re-DMA'd per step) and replicated.
    in_specs = [
        pl.BlockSpec((input_dim, block_n), lambda i: (0, i)),            # x^T
        pl.BlockSpec((hidden_dim, input_dim), lambda i: (0, 0)),         # w_in
        pl.BlockSpec((hidden_dim, 1), lambda i: (0, 0)),                 # b_in
        pl.BlockSpec((L, hidden_dim, hidden_dim), lambda i: (0, 0, 0)),  # w_h
        pl.BlockSpec((L, hidden_dim, 1), lambda i: (0, 0, 0)),           # b_h
        pl.BlockSpec((output_dim, hidden_dim), lambda i: (0, 0)),        # w_out
        pl.BlockSpec((output_dim, 1), lambda i: (0, 0)),                 # b_out
    ]
    out_specs = pl.BlockSpec((output_dim, block_n), lambda i: (0, i))

    y_t = pl.pallas_call(
        kernel,
        out_shape=jax.ShapeDtypeStruct((output_dim, n_pad), jnp.float32),
        grid=grid,
        in_specs=in_specs,
        out_specs=out_specs,
        compiler_params=pltpu.CompilerParams(
            dimension_semantics=("parallel",),
            # Footprint (x/y tiles double-buffered + weights) is ~1 MiB even
            # at block_n=8192, so 32 MiB is a non-binding, safe limit on
            # v5e / v6e / v7x alike.
            vmem_limit_bytes=32 * 1024 * 1024,
        ),
    )(x_t, w_in, b_in, w_h, b_h, w_out, b_out)

    # back to the module's (N, output_dim) convention; drop batch padding
    return y_t[:, :N].T


def init_pinn_params(key, input_dim, hidden_dim, output_dim, num_hidden_layers):
    """Xavier-uniform weights in PyTorch (out, in) layout, zero biases —
    matches nn.init.xavier_uniform_ / zeros_ in the reference module."""
    def xavier(k, fan_out, fan_in):
        bound = np.sqrt(6.0 / (fan_in + fan_out))
        return jax.random.uniform(k, (fan_out, fan_in), jnp.float32, -bound, bound)

    keys = jax.random.split(key, num_hidden_layers + 2)
    w_in = xavier(keys[0], hidden_dim, input_dim)
    b_in = jnp.zeros((hidden_dim, 1), jnp.float32)
    w_h = jnp.stack([xavier(keys[1 + l], hidden_dim, hidden_dim)
                     for l in range(num_hidden_layers)], axis=0)
    b_h = jnp.zeros((num_hidden_layers, hidden_dim, 1), jnp.float32)
    w_out = xavier(keys[-1], output_dim, hidden_dim)
    b_out = jnp.zeros((output_dim, 1), jnp.float32)
    return w_in, b_in, w_h, b_h, w_out, b_out


def pinn_reference(x, params, *, lb, ub, out_scale, activation="tanh"):
    """Plain-JAX batch-major f32 reference (mirrors the PyTorch forward)."""
    w_in, b_in, w_h, b_h, w_out, b_out = params
    act = jnp.tanh if activation == "tanh" else (lambda v: jnp.maximum(v, 0.0))
    if lb is not None and ub is not None:
        x = 2.0 * (x - lb) / (ub - lb) - 1.0
    h = act(x @ w_in.T + b_in[:, 0])
    for l in range(w_h.shape[0]):
        h = act(h @ w_h[l].T + b_h[l, :, 0])
    y = h @ w_out.T + b_out[:, 0]
    if out_scale:
        y = y / out_scale
    return y


if __name__ == "__main__":
    # PINN-style shapes: 2-D input (e.g. (x, t)), 32 hidden units,
    # 3 hidden layers, scalar output; small lane-aligned batch.
    input_dim, hidden_dim, output_dim, num_hidden_layers = 2, 32, 1, 3
    batch = 256

    key = jax.random.PRNGKey(0)
    k_x, k_p = jax.random.split(key)

    x = jax.random.uniform(k_x, (batch, input_dim), jnp.float32, 0.0, 1.0)
    params = init_pinn_params(k_p, input_dim, hidden_dim, output_dim,
                              num_hidden_layers)

    lb = jnp.zeros((1, input_dim), jnp.float32)
    ub = jnp.ones((1, input_dim), jnp.float32)
    out_scale = 2.0

    y_ref = pinn_reference(x, params, lb=lb, ub=ub, out_scale=out_scale,
                           activation="tanh")

    # Exact f32 fallback path: tight match against the reference.
    y_f32 = jax.block_until_ready(
        pinn_forward(x, params, lb=lb, ub=ub, out_scale=out_scale,
                     activation="tanh", precision="f32"))
    np.testing.assert_allclose(np.asarray(y_f32), np.asarray(y_ref),
                               rtol=1e-4, atol=1e-4)

    # Fast path: bf16 MXU operands (+ bf16 activations on v6e/v7x).
    y_bf16 = jax.block_until_ready(
        pinn_forward(x, params, lb=lb, ub=ub, out_scale=out_scale,
                     activation="tanh", precision="bf16"))
    np.testing.assert_allclose(np.asarray(y_bf16), np.asarray(y_ref),
                               rtol=2e-2, atol=2e-2)

    print("KERNEL_OK")
</pallas_src>

<mosaic_0001>
module attributes {stable_mosaic.version = 11 : i64} {
  func.func @_pinn_kernel(%arg0: i32, %arg1: memref<2x256xf32, #tpu.memory_space<vmem>>, %arg2: memref<32x2xf32, #tpu.memory_space<vmem>>, %arg3: memref<32x1xf32, #tpu.memory_space<vmem>>, %arg4: memref<3x32x32xf32, #tpu.memory_space<vmem>>, %arg5: memref<3x32x1xf32, #tpu.memory_space<vmem>>, %arg6: memref<1x32xf32, #tpu.memory_space<vmem>>, %arg7: memref<1x1xf32, #tpu.memory_space<vmem>>, %arg8: memref<1x256xf32, #tpu.memory_space<vmem>>) attributes {dimension_semantics = [#tpu.dimension_semantics<parallel>], iteration_bounds = array<i64: 1>, scalar_prefetch = 0 : i64, scratch_operands = 0 : i64, tpu.core_type = #tpu.core_type<tc>, window_params = [{transform_indices = @transform_0, window_bounds = array<i64: 2, 256>}, {pipeline_mode = #tpu.pipeline_mode<synchronous>, transform_indices = @transform_1, window_bounds = array<i64: 32, 2>}, {pipeline_mode = #tpu.pipeline_mode<synchronous>, transform_indices = @transform_2, window_bounds = array<i64: 32, 1>}, {pipeline_mode = #tpu.pipeline_mode<synchronous>, transform_indices = @transform_3, window_bounds = array<i64: 3, 32, 32>}, {pipeline_mode = #tpu.pipeline_mode<synchronous>, transform_indices = @transform_4, window_bounds = array<i64: 3, 32, 1>}, {pipeline_mode = #tpu.pipeline_mode<synchronous>, transform_indices = @transform_5, window_bounds = array<i64: 1, 32>}, {pipeline_mode = #tpu.pipeline_mode<synchronous>, transform_indices = @transform_6, window_bounds = array<i64: 1, 1>}, {transform_indices = @transform_7, window_bounds = array<i64: 1, 256>}]} {
    %c0 = arith.constant 0 : index
    %c0_0 = arith.constant 0 : index
    %0 = vector.load %arg1[%c0, %c0_0] : memref<2x256xf32, #tpu.memory_space<vmem>>, vector<2x256xf32>
    %c0_1 = arith.constant 0 : index
    %c0_2 = arith.constant 0 : index
    %1 = vector.load %arg2[%c0_1, %c0_2] : memref<32x2xf32, #tpu.memory_space<vmem>>, vector<32x2xf32>
    %cst = arith.constant dense<0.000000e+00> : vector<32x256xf32>
    %2 = tpu.matmul %1, %0, %cst {dimension_numbers = #tpu.dot_dimension_numbers<[1], [0], [0], [1], [0, 0, 1, 1], [], []>} : vector<32x2xf32>, vector<2x256xf32>, vector<32x256xf32> -> vector<32x256xf32>
    %c0_3 = arith.constant 0 : index
    %c0_4 = arith.constant 0 : index
    %3 = vector.load %arg3[%c0_3, %c0_4] : memref<32x1xf32, #tpu.memory_space<vmem>>, vector<32x1xf32>
    %4 = vector.broadcast %3 : vector<32x1xf32> to vector<32x256xf32>
    %5 = arith.addf %2, %4 : vector<32x256xf32>
    %6 = math.tanh %5 : vector<32x256xf32>
    %c0_5 = arith.constant 0 : index
    %c0_6 = arith.constant 0 : index
    %c0_7 = arith.constant 0 : index
    %7 = vector.load %arg4[%c0_5, %c0_6, %c0_7] : memref<3x32x32xf32, #tpu.memory_space<vmem>>, vector<1x32x32xf32>
    %8 = vector.shape_cast %7 : vector<1x32x32xf32> to vector<32x32xf32>
    %cst_8 = arith.constant dense<0.000000e+00> : vector<32x256xf32>
    %9 = tpu.matmul %8, %6, %cst_8 {dimension_numbers = #tpu.dot_dimension_numbers<[1], [0], [0], [1], [0, 0, 1, 1], [], []>} : vector<32x32xf32>, vector<32x256xf32>, vector<32x256xf32> -> vector<32x256xf32>
    %c0_9 = arith.constant 0 : index
    %c0_10 = arith.constant 0 : index
    %c0_11 = arith.constant 0 : index
    %10 = vector.load %arg5[%c0_9, %c0_10, %c0_11] : memref<3x32x1xf32, #tpu.memory_space<vmem>>, vector<1x32x1xf32>
    %11 = vector.shape_cast %10 : vector<1x32x1xf32> to vector<32x1xf32>
    %12 = vector.broadcast %11 : vector<32x1xf32> to vector<32x256xf32>
    %13 = arith.addf %9, %12 : vector<32x256xf32>
    %14 = math.tanh %13 : vector<32x256xf32>
    %c1 = arith.constant 1 : index
    %c0_12 = arith.constant 0 : index
    %c0_13 = arith.constant 0 : index
    %15 = vector.load %arg4[%c1, %c0_12, %c0_13] : memref<3x32x32xf32, #tpu.memory_space<vmem>>, vector<1x32x32xf32>
    %16 = vector.shape_cast %15 : vector<1x32x32xf32> to vector<32x32xf32>
    %cst_14 = arith.constant dense<0.000000e+00> : vector<32x256xf32>
    %17 = tpu.matmul %16, %14, %cst_14 {dimension_numbers = #tpu.dot_dimension_numbers<[1], [0], [0], [1], [0, 0, 1, 1], [], []>} : vector<32x32xf32>, vector<32x256xf32>, vector<32x256xf32> -> vector<32x256xf32>
    %c1_15 = arith.constant 1 : index
    %c0_16 = arith.constant 0 : index
    %c0_17 = arith.constant 0 : index
    %18 = vector.load %arg5[%c1_15, %c0_16, %c0_17] : memref<3x32x1xf32, #tpu.memory_space<vmem>>, vector<1x32x1xf32>
    %19 = vector.shape_cast %18 : vector<1x32x1xf32> to vector<32x1xf32>
    %20 = vector.broadcast %19 : vector<32x1xf32> to vector<32x256xf32>
    %21 = arith.addf %17, %20 : vector<32x256xf32>
    %22 = math.tanh %21 : vector<32x256xf32>
    %c2 = arith.constant 2 : index
    %c0_18 = arith.constant 0 : index
    %c0_19 = arith.constant 0 : index
    %23 = vector.load %arg4[%c2, %c0_18, %c0_19] : memref<3x32x32xf32, #tpu.memory_space<vmem>>, vector<1x32x32xf32>
    %24 = vector.shape_cast %23 : vector<1x32x32xf32> to vector<32x32xf32>
    %cst_20 = arith.constant dense<0.000000e+00> : vector<32x256xf32>
    %25 = tpu.matmul %24, %22, %cst_20 {dimension_numbers = #tpu.dot_dimension_numbers<[1], [0], [0], [1], [0, 0, 1, 1], [], []>} : vector<32x32xf32>, vector<32x256xf32>, vector<32x256xf32> -> vector<32x256xf32>
    %c2_21 = arith.constant 2 : index
    %c0_22 = arith.constant 0 : index
    %c0_23 = arith.constant 0 : index
    %26 = vector.load %arg5[%c2_21, %c0_22, %c0_23] : memref<3x32x1xf32, #tpu.memory_space<vmem>>, vector<1x32x1xf32>
    %27 = vector.shape_cast %26 : vector<1x32x1xf32> to vector<32x1xf32>
    %28 = vector.broadcast %27 : vector<32x1xf32> to vector<32x256xf32>
    %29 = arith.addf %25, %28 : vector<32x256xf32>
    %30 = math.tanh %29 : vector<32x256xf32>
    %c0_24 = arith.constant 0 : index
    %c0_25 = arith.constant 0 : index
    %31 = vector.load %arg6[%c0_24, %c0_25] : memref<1x32xf32, #tpu.memory_space<vmem>>, vector<1x32xf32>
    %cst_26 = arith.constant dense<0.000000e+00> : vector<1x256xf32>
    %32 = tpu.matmul %31, %30, %cst_26 {dimension_numbers = #tpu.dot_dimension_numbers<[1], [0], [0], [1], [0, 0, 1, 1], [], []>} : vector<1x32xf32>, vector<32x256xf32>, vector<1x256xf32> -> vector<1x256xf32>
    %c0_27 = arith.constant 0 : index
    %c0_28 = arith.constant 0 : index
    %33 = vector.load %arg7[%c0_27, %c0_28] : memref<1x1xf32, #tpu.memory_space<vmem>>, vector<1x1xf32>
    %34 = vector.broadcast %33 : vector<1x1xf32> to vector<1x256xf32>
    %35 = arith.addf %32, %34 : vector<1x256xf32>
    %c0_29 = arith.constant 0 : index
    %c0_30 = arith.constant 0 : index
    %36 = vector.load %arg8[%c0_29, %c0_30] : memref<1x256xf32, #tpu.memory_space<vmem>>, vector<1x256xf32>
    tpu.vector_store %arg8[%c0_29, %c0_30], %35 {strides = array<i32>} : memref<1x256xf32, #tpu.memory_space<vmem>>, vector<1x256xf32>,
    return
  }
  func.func @transform_0(%arg0: i32) -> (i32, i32) {
    %c0_i32 = arith.constant 0 : i32
    %c0_i32_0 = arith.constant 0 : i32
    return %c0_i32, %arg0 : i32, i32
  }
  func.func @transform_1(%arg0: i32) -> (i32, i32) {
    %c0_i32 = arith.constant 0 : i32
    %c0_i32_0 = arith.constant 0 : i32
    %c0_i32_1 = arith.constant 0 : i32
    return %c0_i32, %c0_i32_0 : i32, i32
  }
  func.func @transform_2(%arg0: i32) -> (i32, i32) {
    %c0_i32 = arith.constant 0 : i32
    %c0_i32_0 = arith.constant 0 : i32
    %c0_i32_1 = arith.constant 0 : i32
    return %c0_i32, %c0_i32_0 : i32, i32
  }
  func.func @transform_3(%arg0: i32) -> (i32, i32, i32) {
    %c0_i32 = arith.constant 0 : i32
    %c0_i32_0 = arith.constant 0 : i32
    %c0_i32_1 = arith.constant 0 : i32
    %c0_i32_2 = arith.constant 0 : i32
    return %c0_i32, %c0_i32_0, %c0_i32_1 : i32, i32, i32
  }
  func.func @transform_4(%arg0: i32) -> (i32, i32, i32) {
    %c0_i32 = arith.constant 0 : i32
    %c0_i32_0 = arith.constant 0 : i32
    %c0_i32_1 = arith.constant 0 : i32
    %c0_i32_2 = arith.constant 0 : i32
    return %c0_i32, %c0_i32_0, %c0_i32_1 : i32, i32, i32
  }
  func.func @transform_5(%arg0: i32) -> (i32, i32) {
    %c0_i32 = arith.constant 0 : i32
    %c0_i32_0 = arith.constant 0 : i32
    %c0_i32_1 = arith.constant 0 : i32
    return %c0_i32, %c0_i32_0 : i32, i32
  }
  func.func @transform_6(%arg0: i32) -> (i32, i32) {
    %c0_i32 = arith.constant 0 : i32
    %c0_i32_0 = arith.constant 0 : i32
    %c0_i32_1 = arith.constant 0 : i32
    return %c0_i32, %c0_i32_0 : i32, i32
  }
  func.func @transform_7(%arg0: i32) -> (i32, i32) {
    %c0_i32 = arith.constant 0 : i32
    %c0_i32_0 = arith.constant 0 : i32
    return %c0_i32, %arg0 : i32, i32
  }
}

</mosaic_0001>

<llo_original>
// kernel: tpu_custom_call.1
$region0: #{tpu_custom_call.1}
  #allocation0 [shape = 'u32[]', space=smem, size = 0x4, offset = 0x4, fixed_abs, tag = 'smem constant byte address 0x4 - core index']
  #allocation1 [shape = 'u32[144,128]{1,0:T(1,128)}', space=vmem, size = 0x12000, scoped, tag = 'internal scratch']
  #allocation2 [shape = 'f32[1,1]{1,0:T(1,128)S(1)}', space=vmem, size = 0x200, scoped, tag = 'scoped memory for tpu_custom_call.1']
  %s0 = inlined_call_operand.vmem [shape: f32[2,256], index: 0, kind: input, shape index: {}]
  %s1 = inlined_call_operand.vmem [shape: f32[32,2], index: 1, kind: input, shape index: {}]
  %s2 = inlined_call_operand.vmem [shape: f32[32,1], index: 2, kind: input, shape index: {}]
  %s3 = inlined_call_operand.vmem [shape: f32[3,32,32], index: 3, kind: input, shape index: {}]
  %s4 = inlined_call_operand.vmem [shape: f32[3,32,1], index: 4, kind: input, shape index: {}]
  %s5 = inlined_call_operand.vmem [shape: f32[1,32], index: 5, kind: input, shape index: {}]
  %s6 = inlined_call_operand.<no memory space> [shape: f32[1,1], index: 6, kind: input, shape index: {}]
  %s7 = inlined_call_operand.hbm [shape: f32[1,256], index: 7, kind: output, shape index: {}]
  %s8 = sld [smem:[#allocation0]]
  $region38: #{tpu_custom_call.1} parent=0
    _
  %s10 = ssub.s32 1, %s8
  %s11 = scalar_select 0, %s10, %s8
  %v12 = vstv %s6
  %13 = vst [vmem:[#allocation2] sm:$0x1] %v12
  $region1: #{tpu_custom_call.1} parent=0
    #allocation3 [shape = 'u8[1024]{0}', space=vmem, size = 0x400, scoped, tag = 'output window, operand 0, single buffered']
    #allocation4 [shape = 's32[1]{0}', space=sflag, size = 0x4, scoped, tag = 'scoped memory for tpu_custom_call.1']
    %14 = vsyncpa [#allocation4], 0
    // Predicated region
    $region2: #{tpu_custom_call.1} parent=1 // pred_check
      _
    $region3: #{tpu_custom_call.1} parent=1 // pred_check_branch
      %16 = sbr.rel (0) target = $region5
    $region4: #{tpu_custom_call.1} parent=1 // pred_region
      _
    $region5: #{tpu_custom_call.1} parent=1 // pred_fallthru
      _
    // Predicated region
    $region6: #{tpu_custom_call.1} parent=1 // pred_check
      _
    $region7: #{tpu_custom_call.1} parent=1 // pred_check_branch
      %18 = sbr.rel (0) target = $region9
    $region8: #{tpu_custom_call.1} parent=1 // pred_region
      _
    $region9: #{tpu_custom_call.1} parent=1 // pred_fallthru
      _
    // Predicated region
    $region10: #{tpu_custom_call.1} parent=1 // pred_check
      _
    $region11: #{tpu_custom_call.1} parent=1 // pred_check_branch
      %20 = sbr.rel (0) target = $region13
    $region12: #{tpu_custom_call.1} parent=1 // pred_region
      _
    $region13: #{tpu_custom_call.1} parent=1 // pred_fallthru
      _
    // Predicated region
    $region14: #{tpu_custom_call.1} parent=1 // pred_check
      _
    $region15: #{tpu_custom_call.1} parent=1 // pred_check_branch
      %22 = sbr.rel (0) target = $region17
    $region16: #{tpu_custom_call.1} parent=1 // pred_region
      _
    $region17: #{tpu_custom_call.1} parent=1 // pred_fallthru
      _
    // Predicated region
    $region18: #{tpu_custom_call.1} parent=1 // pred_check
      _
    $region19: #{tpu_custom_call.1} parent=1 // pred_check_branch
      %24 = sbr.rel (0) target = $region21
    $region20: #{tpu_custom_call.1} parent=1 // pred_region
      _
    $region21: #{tpu_custom_call.1} parent=1 // pred_fallthru
      _
    // Predicated region
    $region22: #{tpu_custom_call.1} parent=1 // pred_check
      _
    $region23: #{tpu_custom_call.1} parent=1 // pred_check_branch
      %26 = sbr.rel (0) target = $region25
    $region24: #{tpu_custom_call.1} parent=1 // pred_region
      _
    $region25: #{tpu_custom_call.1} parent=1 // pred_fallthru
      _
    // Predicated region
    $region26: #{tpu_custom_call.1} parent=1 // pred_check
      _
    $region27: #{tpu_custom_call.1} parent=1 // pred_check_branch
      %28 = sbr.rel (0) target = $region29
    $region28: #{tpu_custom_call.1} parent=1 // pred_region
      _
    $region29: #{tpu_custom_call.1} parent=1 // pred_fallthru
      _
    %v29 = vld [vmem:[%s0] sm:$0xf]
    %v30 = vld [vmem:[%s1] sm:$0xff]
    %v31 = vld [vmem:[%s1 + $0x8] sm:$0xff]
    %v32 = vld [vmem:[%s1 + $0x10] sm:$0xff]
    %v33 = vld [vmem:[%s1 + $0x18] sm:$0xff]
    %v34 = vld [vmem:[%s2] sm:$0xff]
    %v35 = vld [vmem:[%s2 + $0x8] sm:$0xff]
    %v36 = vld [vmem:[%s2 + $0x10] sm:$0xff]
    %v37 = vld [vmem:[%s2 + $0x18] sm:$0xff]
    %39 = vset.pattern.permute.xlu0 0
    %40 = vperm.xlu0 %39, %v34
    %v41 = vpop.permute.xlu0 %40
    %44 = vset.pattern.permute.xlu0 0
    %45 = vperm.xlu0 %44, %v35
    %v46 = vpop.permute.xlu0 %45
    %49 = vset.pattern.permute.xlu0 0
    %50 = vperm.xlu0 %49, %v36
    %v51 = vpop.permute.xlu0 %50
    %54 = vset.pattern.permute.xlu0 0
    %55 = vperm.xlu0 %54, %v37
    %v56 = vpop.permute.xlu0 %55
    %v60 = vunpack.c.l.s4 1983009808
    %v61 = vunpack.c.0.s8 %v60
    %v62 = vlaneseq
    %v63 = vshrl.u32 %v62, 7
    %v64 = vsub.s32 %v61, %v63
    %v65 = vrot.slane %v29, %v64
    %v66 = vcombine.high %v65, %v65
    %vm67 = vcmask 15360
    %v69 = vsel %vm67, %v30, 0
    %v72 = vsel %vm67, %v31, 0
    %v75 = vsel %vm67, %v32, 0
    %v78 = vsel %vm67, %v33, 0
    %vm80 = vcmask 1041408
    %v81 = vsel %vm80, %v65, 0
    %v83 = vsel %vm80, %v66, 0
    %85 = vmatprep.subr.mxu0 %v83
    %86 = vmatpush1.msra.mxu0 %v81
    %87 = vmatprep.subr.mxu0 0.0
    %88 = vmatpush1.msra.mxu0 0.0
    %89 = vmatprep.subr.mxu0 0.0
    %90 = vmatpush1.msra.mxu0 0.0
    %91 = vmatprep.subr.mxu0 0.0
    %92 = vmatpush1.msra.mxu0 0.0
    %93 = vmatprep.subr.mxu0 0.0
    %94 = vmatpush1.msra.mxu0 0.0
    %95 = vmatprep.subr.mxu0 0.0
    %96 = vmatpush1.msra.mxu0 0.0
    %97 = vmatprep.subr.mxu0 0.0
    %98 = vmatpush1.msra.mxu0 0.0
    %99 = vmatprep.subr.mxu0 0.0
    %100 = vmatpush1.msra.mxu0 0.0
    %101 = vmatprep.subr.mxu0 0.0
    %102 = vmatpush1.msra.mxu0 0.0
    %103 = vmatprep.subr.mxu0 0.0
    %104 = vmatpush1.msra.mxu0 0.0
    %105 = vmatprep.subr.mxu0 0.0
    %106 = vmatpush1.msra.mxu0 0.0
    %107 = vmatprep.subr.mxu0 0.0
    %108 = vmatpush1.msra.mxu0 0.0
    %109 = vmatprep.subr.mxu0 0.0
    %110 = vmatpush1.msra.mxu0 0.0
    %111 = vmatprep.subr.mxu0 0.0
    %112 = vmatpush1.msra.mxu0 0.0
    %113 = vmatprep.subr.mxu0 0.0
    %114 = vmatpush1.msra.mxu0 0.0
    %115 = vmatprep.subr.mxu0 0.0
    %116 = vmatpush1.msra.mxu0 0.0
    %117 = vmatprep.subr.mxu0 0.0
    %118 = vmatpush1.msra.mxu0 0.0
    %119 = vmatprep.subr.mxu0 0.0
    %120 = vmatpush1.msra.mxu0 0.0
    %121 = vmatprep.subr.mxu0 0.0
    %122 = vmatpush1.msra.mxu0 0.0
    %123 = vmatprep.subr.mxu0 0.0
    %124 = vmatpush1.msra.mxu0 0.0
    %125 = vmatprep.subr.mxu0 0.0
    %126 = vmatpush1.msra.mxu0 0.0
    %127 = vmatprep.subr.mxu0 0.0
    %128 = vmatpush1.msra.mxu0 0.0
    %129 = vmatprep.subr.mxu0 0.0
    %130 = vmatpush1.msra.mxu0 0.0
    %131 = vmatprep.subr.mxu0 0.0
    %132 = vmatpush1.msra.mxu0 0.0
    %133 = vmatprep.subr.mxu0 0.0
    %134 = vmatpush1.msra.mxu0 0.0
    %135 = vmatprep.subr.mxu0 0.0
    %136 = vmatpush1.msra.mxu0 0.0
    %137 = vmatprep.subr.mxu0 0.0
    %138 = vmatpush1.msra.mxu0 0.0
    %139 = vmatprep.subr.mxu0 0.0
    %140 = vmatpush1.msra.mxu0 0.0
    %141 = vmatprep.subr.mxu0 0.0
    %142 = vmatpush1.msra.mxu0 0.0
    %143 = vmatprep.subr.mxu0 0.0
    %144 = vmatpush1.msra.mxu0 0.0
    %145 = vmatprep.subr.mxu0 0.0
    %146 = vmatpush1.msra.mxu0 0.0
    %147 = vmatprep.subr.mxu0 0.0
    %148 = vmatpush1.msra.mxu0 0.0
    %149 = vmatprep.mubr.f32.mxu0 0.0
    %150 = vmatmul.mubr.f32.gmra.mrb[0].mxu0 %v69
    %v151 = vpop.f32.mrb[0].mxu0
    %v152 = vadd.f32 %v41, %v151
    %v153 = vpop.f32.mrb[0].mxu0
    %v154 = vadd.f32 %v41, %v153
    %155 = vmatprep.mubr.f32.mxu0 0.0
    %156 = vmatmul.mubr.f32.gmra.mrb[0].mxu0 %v72
    %v157 = vpop.f32.mrb[0].mxu0
    %v158 = vadd.f32 %v46, %v157
    %v159 = vpop.f32.mrb[0].mxu0
    %v160 = vadd.f32 %v46, %v159
    %161 = vmatprep.mubr.f32.mxu0 0.0
    %162 = vmatmul.mubr.f32.gmra.mrb[0].mxu0 %v75
    %v163 = vpop.f32.mrb[0].mxu0
    %v164 = vadd.f32 %v51, %v163
    %v165 = vpop.f32.mrb[0].mxu0
    %v166 = vadd.f32 %v51, %v165
    %167 = vmatprep.mubr.f32.mxu0 0.0
    %168 = vmatmul.mubr.f32.gmra.mrb[0].mxu0 %v78
    %v169 = vpop.f32.mrb[0].mxu0
    %v170 = vadd.f32 %v56, %v169
    %v171 = vpop.f32.mrb[0].mxu0
    %v172 = vadd.f32 %v56, %v171
    %173 = vdwg.mxu0
    %v174 = vtanh.pop %v152
    %v175 = vtanh.pop %v154
    %v176 = vtanh.pop %v158
    %v177 = vtanh.pop %v160
    %v178 = vtanh.pop %v164
    %v179 = vtanh.pop %v166
    %v180 = vtanh.pop %v170
    %v181 = vtanh.pop %v172
    %v182 = vld [vmem:[%s3] sm:$0xff]
    %v183 = vld [vmem:[%s3 + $0x8] sm:$0xff]
    %v184 = vld [vmem:[%s3 + $0x10] sm:$0xff]
    %v185 = vld [vmem:[%s3 + $0x18] sm:$0xff]
    %v186 = vld [vmem:[%s4] sm:$0xff]
    %v187 = vld [vmem:[%s4 + $0x8] sm:$0xff]
    %v188 = vld [vmem:[%s4 + $0x10] sm:$0xff]
    %v189 = vld [vmem:[%s4 + $0x18] sm:$0xff]
    %191 = vset.pattern.permute.xlu0 0
    %192 = vperm.xlu0 %191, %v186
    %v193 = vpop.permute.xlu0 %192
    %196 = vset.pattern.permute.xlu0 0
    %197 = vperm.xlu0 %196, %v187
    %v198 = vpop.permute.xlu0 %197
    %201 = vset.pattern.permute.xlu0 0
    %202 = vperm.xlu0 %201, %v188
    %v203 = vpop.permute.xlu0 %202
    %206 = vset.pattern.permute.xlu0 0
    %207 = vperm.xlu0 %206, %v189
    %v208 = vpop.permute.xlu0 %207
    %vm210 = vcmask 261120
    %v212 = vsel %vm210, %v182, 0
    %v215 = vsel %vm210, %v183, 0
    %v218 = vsel %vm210, %v184, 0
    %v221 = vsel %vm210, %v185, 0
    %223 = vmatprep.subr.mxu0 %v175
    %224 = vmatpush1.msra.mxu0 %v174
    %225 = vmatprep.subr.mxu0 %v177
    %226 = vmatpush1.msra.mxu0 %v176
    %227 = vmatprep.subr.mxu0 %v179
    %228 = vmatpush1.msra.mxu0 %v178
    %229 = vmatprep.subr.mxu0 %v181
    %230 = vmatpush1.msra.mxu0 %v180
    %231 = vmatprep.subr.mxu0 0.0
    %232 = vmatpush1.msra.mxu0 0.0
    %233 = vmatprep.subr.mxu0 0.0
    %234 = vmatpush1.msra.mxu0 0.0
    %235 = vmatprep.subr.mxu0 0.0
    %236 = vmatpush1.msra.mxu0 0.0
    %237 = vmatprep.subr.mxu0 0.0
    %238 = vmatpush1.msra.mxu0 0.0
    %239 = vmatprep.subr.mxu0 0.0
    %240 = vmatpush1.msra.mxu0 0.0
    %241 = vmatprep.subr.mxu0 0.0
    %242 = vmatpush1.msra.mxu0 0.0
    %243 = vmatprep.subr.mxu0 0.0
    %244 = vmatpush1.msra.mxu0 0.0
    %245 = vmatprep.subr.mxu0 0.0
    %246 = vmatpush1.msra.mxu0 0.0
    %247 = vmatprep.subr.mxu0 0.0
    %248 = vmatpush1.msra.mxu0 0.0
    %249 = vmatprep.subr.mxu0 0.0
    %250 = vmatpush1.msra.mxu0 0.0
    %251 = vmatprep.subr.mxu0 0.0
    %252 = vmatpush1.msra.mxu0 0.0
    %253 = vmatprep.subr.mxu0 0.0
    %254 = vmatpush1.msra.mxu0 0.0
    %255 = vmatprep.subr.mxu0 0.0
    %256 = vmatpush1.msra.mxu0 0.0
    %257 = vmatprep.subr.mxu0 0.0
    %258 = vmatpush1.msra.mxu0 0.0
    %259 = vmatprep.subr.mxu0 0.0
    %260 = vmatpush1.msra.mxu0 0.0
    %261 = vmatprep.subr.mxu0 0.0
    %262 = vmatpush1.msra.mxu0 0.0
    %263 = vmatprep.subr.mxu0 0.0
    %264 = vmatpush1.msra.mxu0 0.0
    %265 = vmatprep.subr.mxu0 0.0
    %266 = vmatpush1.msra.mxu0 0.0
    %267 = vmatprep.subr.mxu0 0.0
    %268 = vmatpush1.msra.mxu0 0.0
    %269 = vmatprep.subr.mxu0 0.0
    %270 = vmatpush1.msra.mxu0 0.0
    %271 = vmatprep.subr.mxu0 0.0
    %272 = vmatpush1.msra.mxu0 0.0
    %273 = vmatprep.subr.mxu0 0.0
    %274 = vmatpush1.msra.mxu0 0.0
    %275 = vmatprep.subr.mxu0 0.0
    %276 = vmatpush1.msra.mxu0 0.0
    %277 = vmatprep.subr.mxu0 0.0
    %278 = vmatpush1.msra.mxu0 0.0
    %279 = vmatprep.subr.mxu0 0.0
    %280 = vmatpush1.msra.mxu0 0.0
    %281 = vmatprep.subr.mxu0 0.0
    %282 = vmatpush1.msra.mxu0 0.0
    %283 = vmatprep.subr.mxu0 0.0
    %284 = vmatpush1.msra.mxu0 0.0
    %285 = vmatprep.subr.mxu0 0.0
    %286 = vmatpush1.msra.mxu0 0.0
    %287 = vmatprep.mubr.f32.mxu0 0.0
    %288 = vmatmul.mubr.f32.gmra.mrb[0].mxu0 %v212
    %v289 = vpop.f32.mrb[0].mxu0
    %v290 = vadd.f32 %v193, %v289
    %v291 = vpop.f32.mrb[0].mxu0
    %v292 = vadd.f32 %v193, %v291
    %293 = vmatprep.mubr.f32.mxu0 0.0
    %294 = vmatmul.mubr.f32.gmra.mrb[0].mxu0 %v215
    %v295 = vpop.f32.mrb[0].mxu0
    %v296 = vadd.f32 %v198, %v295
    %v297 = vpop.f32.mrb[0].mxu0
    %v298 = vadd.f32 %v198, %v297
    %299 = vmatprep.mubr.f32.mxu0 0.0
    %300 = vmatmul.mubr.f32.gmra.mrb[0].mxu0 %v218
    %v301 = vpop.f32.mrb[0].mxu0
    %v302 = vadd.f32 %v203, %v301
    %v303 = vpop.f32.mrb[0].mxu0
    %v304 = vadd.f32 %v203, %v303
    %305 = vmatprep.mubr.f32.mxu0 0.0
    %306 = vmatmul.mubr.f32.gmra.mrb[0].mxu0 %v221
    %v307 = vpop.f32.mrb[0].mxu0
    %v308 = vadd.f32 %v208, %v307
    %v309 = vpop.f32.mrb[0].mxu0
    %v310 = vadd.f32 %v208, %v309
    %311 = vdwg.mxu0
    %v312 = vtanh.pop %v290
    %v313 = vtanh.pop %v292
    %v314 = vtanh.pop %v296
    %v315 = vtanh.pop %v298
    %v316 = vtanh.pop %v302
    %v317 = vtanh.pop %v304
    %v318 = vtanh.pop %v308
    %v319 = vtanh.pop %v310
    %s320 = scalar_lea.vmem %s3, 32
    %v321 = vld [vmem:[%s320] sm:$0xff]
    %v322 = vld [vmem:[%s320 + $0x8] sm:$0xff]
    %v323 = vld [vmem:[%s320 + $0x10] sm:$0xff]
    %v324 = vld [vmem:[%s320 + $0x18] sm:$0xff]
    %s325 = scalar_lea.vmem %s4, 32
    %v326 = vld [vmem:[%s325] sm:$0xff]
    %v327 = vld [vmem:[%s325 + $0x8] sm:$0xff]
    %v328 = vld [vmem:[%s325 + $0x10] sm:$0xff]
    %v329 = vld [vmem:[%s325 + $0x18] sm:$0xff]
    %331 = vset.pattern.permute.xlu0 0
    %332 = vperm.xlu0 %331, %v326
    %v333 = vpop.permute.xlu0 %332
    %336 = vset.pattern.permute.xlu0 0
    %337 = vperm.xlu0 %336, %v327
    %v338 = vpop.permute.xlu0 %337
    %341 = vset.pattern.permute.xlu0 0
    %342 = vperm.xlu0 %341, %v328
    %v343 = vpop.permute.xlu0 %342
    %346 = vset.pattern.permute.xlu0 0
    %347 = vperm.xlu0 %346, %v329
    %v348 = vpop.permute.xlu0 %347
    %v351 = vsel %vm210, %v321, 0
    %v354 = vsel %vm210, %v322, 0
    %v357 = vsel %vm210, %v323, 0
    %v360 = vsel %vm210, %v324, 0
    %362 = vmatprep.subr.mxu0 %v313
    %363 = vmatpush1.msra.mxu0 %v312
    %364 = vmatprep.subr.mxu0 %v315
    %365 = vmatpush1.msra.mxu0 %v314
    %366 = vmatprep.subr.mxu0 %v317
    %367 = vmatpush1.msra.mxu0 %v316
    %368 = vmatprep.subr.mxu0 %v319
    %369 = vmatpush1.msra.mxu0 %v318
    %370 = vmatprep.subr.mxu0 0.0
    %371 = vmatpush1.msra.mxu0 0.0
    %372 = vmatprep.subr.mxu0 0.0
    %373 = vmatpush1.msra.mxu0 0.0
    %374 = vmatprep.subr.mxu0 0.0
    %375 = vmatpush1.msra.mxu0 0.0
    %376 = vmatprep.subr.mxu0 0.0
    %377 = vmatpush1.msra.mxu0 0.0
    %378 = vmatprep.subr.mxu0 0.0
    %379 = vmatpush1.msra.mxu0 0.0
    %380 = vmatprep.subr.mxu0 0.0
    %381 = vmatpush1.msra.mxu0 0.0
    %382 = vmatprep.subr.mxu0 0.0
    %383 = vmatpush1.msra.mxu0 0.0
    %384 = vmatprep.subr.mxu0 0.0
    %385 = vmatpush1.msra.mxu0 0.0
    %386 = vmatprep.subr.mxu0 0.0
    %387 = vmatpush1.msra.mxu0 0.0
    %388 = vmatprep.subr.mxu0 0.0
    %389 = vmatpush1.msra.mxu0 0.0
    %390 = vmatprep.subr.mxu0 0.0
    %391 = vmatpush1.msra.mxu0 0.0
    %392 = vmatprep.subr.mxu0 0.0
    %393 = vmatpush1.msra.mxu0 0.0
    %394 = vmatprep.subr.mxu0 0.0
    %395 = vmatpush1.msra.mxu0 0.0
    %396 = vmatprep.subr.mxu0 0.0
    %397 = vmatpush1.msra.mxu0 0.0
    %398 = vmatprep.subr.mxu0 0.0
    %399 = vmatpush1.msra.mxu0 0.0
    %400 = vmatprep.subr.mxu0 0.0
    %401 = vmatpush1.msra.mxu0 0.0
    %402 = vmatprep.subr.mxu0 0.0
    %403 = vmatpush1.msra.mxu0 0.0
    %404 = vmatprep.subr.mxu0 0.0
    %405 = vmatpush1.msra.mxu0 0.0
    %406 = vmatprep.subr.mxu0 0.0
    %407 = vmatpush1.msra.mxu0 0.0
    %408 = vmatprep.subr.mxu0 0.0
    %409 = vmatpush1.msra.mxu0 0.0
    %410 = vmatprep.subr.mxu0 0.0
    %411 = vmatpush1.msra.mxu0 0.0
    %412 = vmatprep.subr.mxu0 0.0
    %413 = vmatpush1.msra.mxu0 0.0
    %414 = vmatprep.subr.mxu0 0.0
    %415 = vmatpush1.msra.mxu0 0.0
    %416 = vmatprep.subr.mxu0 0.0
    %417 = vmatpush1.msra.mxu0 0.0
    %418 = vmatprep.subr.mxu0 0.0
    %419 = vmatpush1.msra.mxu0 0.0
    %420 = vmatprep.subr.mxu0 0.0
    %421 = vmatpush1.msra.mxu0 0.0
    %422 = vmatprep.subr.mxu0 0.0
    %423 = vmatpush1.msra.mxu0 0.0
    %424 = vmatprep.subr.mxu0 0.0
    %425 = vmatpush1.msra.mxu0 0.0
    %426 = vmatprep.mubr.f32.mxu0 0.0
    %427 = vmatmul.mubr.f32.gmra.mrb[0].mxu0 %v351
    %v428 = vpop.f32.mrb[0].mxu0
    %v429 = vadd.f32 %v333, %v428
    %v430 = vpop.f32.mrb[0].mxu0
    %v431 = vadd.f32 %v333, %v430
    %432 = vmatprep.mubr.f32.mxu0 0.0
    %433 = vmatmul.mubr.f32.gmra.mrb[0].mxu0 %v354
    %v434 = vpop.f32.mrb[0].mxu0
    %v435 = vadd.f32 %v338, %v434
    %v436 = vpop.f32.mrb[0].mxu0
    %v437 = vadd.f32 %v338, %v436
    %438 = vmatprep.mubr.f32.mxu0 0.0
    %439 = vmatmul.mubr.f32.gmra.mrb[0].mxu0 %v357
    %v440 = vpop.f32.mrb[0].mxu0
    %v441 = vadd.f32 %v343, %v440
    %v442 = vpop.f32.mrb[0].mxu0
    %v443 = vadd.f32 %v343, %v442
    %444 = vmatprep.mubr.f32.mxu0 0.0
    %445 = vmatmul.mubr.f32.gmra.mrb[0].mxu0 %v360
    %v446 = vpop.f32.mrb[0].mxu0
    %v447 = vadd.f32 %v348, %v446
    %v448 = vpop.f32.mrb[0].mxu0
    %v449 = vadd.f32 %v348, %v448
    %450 = vdwg.mxu0
    %v451 = vtanh.pop %v429
    %v452 = vtanh.pop %v431
    %v453 = vtanh.pop %v435
    %v454 = vtanh.pop %v437
    %v455 = vtanh.pop %v441
    %v456 = vtanh.pop %v443
    %v457 = vtanh.pop %v447
    %v458 = vtanh.pop %v449
    %s459 = scalar_lea.vmem %s3, 64
    %v460 = vld [vmem:[%s459] sm:$0xff]
    %v461 = vld [vmem:[%s459 + $0x8] sm:$0xff]
    %v462 = vld [vmem:[%s459 + $0x10] sm:$0xff]
    %v463 = vld [vmem:[%s459 + $0x18] sm:$0xff]
    %s464 = scalar_lea.vmem %s4, 64
    %v465 = vld [vmem:[%s464] sm:$0xff]
    %v466 = vld [vmem:[%s464 + $0x8] sm:$0xff]
    %v467 = vld [vmem:[%s464 + $0x10] sm:$0xff]
    %v468 = vld [vmem:[%s464 + $0x18] sm:$0xff]
    %470 = vset.pattern.permute.xlu0 0
    %471 = vperm.xlu0 %470, %v465
    %v472 = vpop.permute.xlu0 %471
    %475 = vset.pattern.permute.xlu0 0
    %476 = vperm.xlu0 %475, %v466
    %v477 = vpop.permute.xlu0 %476
    %480 = vset.pattern.permute.xlu0 0
    %481 = vperm.xlu0 %480, %v467
    %v482 = vpop.permute.xlu0 %481
    %485 = vset.pattern.permute.xlu0 0
    %486 = vperm.xlu0 %485, %v468
    %v487 = vpop.permute.xlu0 %486
    %v490 = vsel %vm210, %v460, 0
    %v493 = vsel %vm210, %v461, 0
    %v496 = vsel %vm210, %v462, 0
    %v499 = vsel %vm210, %v463, 0
    %501 = vmatprep.subr.mxu0 %v452
    %502 = vmatpush1.msra.mxu0 %v451
    %503 = vmatprep.subr.mxu0 %v454
    %504 = vmatpush1.msra.mxu0 %v453
    %505 = vmatprep.subr.mxu0 %v456
    %506 = vmatpush1.msra.mxu0 %v455
    %507 = vmatprep.subr.mxu0 %v458
    %508 = vmatpush1.msra.mxu0 %v457
    %509 = vmatprep.subr.mxu0 0.0
    %510 = vmatpush1.msra.mxu0 0.0
    %511 = vmatprep.subr.mxu0 0.0
    %512 = vmatpush1.msra.mxu0 0.0
    %513 = vmatprep.subr.mxu0 0.0
    %514 = vmatpush1.msra.mxu0 0.0
    %515 = vmatprep.subr.mxu0 0.0
    %516 = vmatpush1.msra.mxu0 0.0
    %517 = vmatprep.subr.mxu0 0.0
    %518 = vmatpush1.msra.mxu0 0.0
    %519 = vmatprep.subr.mxu0 0.0
    %520 = vmatpush1.msra.mxu0 0.0
    %521 = vmatprep.subr.mxu0 0.0
    %522 = vmatpush1.msra.mxu0 0.0
    %523 = vmatprep.subr.mxu0 0.0
    %524 = vmatpush1.msra.mxu0 0.0
    %525 = vmatprep.subr.mxu0 0.0
    %526 = vmatpush1.msra.mxu0 0.0
    %527 = vmatprep.subr.mxu0 0.0
    %528 = vmatpush1.msra.mxu0 0.0
    %529 = vmatprep.subr.mxu0 0.0
    %530 = vmatpush1.msra.mxu0 0.0
    %531 = vmatprep.subr.mxu0 0.0
    %532 = vmatpush1.msra.mxu0 0.0
    %533 = vmatprep.subr.mxu0 0.0
    %534 = vmatpush1.msra.mxu0 0.0
    %535 = vmatprep.subr.mxu0 0.0
    %536 = vmatpush1.msra.mxu0 0.0
    %537 = vmatprep.subr.mxu0 0.0
    %538 = vmatpush1.msra.mxu0 0.0
    %539 = vmatprep.subr.mxu0 0.0
    %540 = vmatpush1.msra.mxu0 0.0
    %541 = vmatprep.subr.mxu0 0.0
    %542 = vmatpush1.msra.mxu0 0.0
    %543 = vmatprep.subr.mxu0 0.0
    %544 = vmatpush1.msra.mxu0 0.0
    %545 = vmatprep.subr.mxu0 0.0
    %546 = vmatpush1.msra.mxu0 0.0
    %547 = vmatprep.subr.mxu0 0.0
    %548 = vmatpush1.msra.mxu0 0.0
    %549 = vmatprep.subr.mxu0 0.0
    %550 = vmatpush1.msra.mxu0 0.0
    %551 = vmatprep.subr.mxu0 0.0
    %552 = vmatpush1.msra.mxu0 0.0
    %553 = vmatprep.subr.mxu0 0.0
    %554 = vmatpush1.msra.mxu0 0.0
    %555 = vmatprep.subr.mxu0 0.0
    %556 = vmatpush1.msra.mxu0 0.0
    %557 = vmatprep.subr.mxu0 0.0
    %558 = vmatpush1.msra.mxu0 0.0
    %559 = vmatprep.subr.mxu0 0.0
    %560 = vmatpush1.msra.mxu0 0.0
    %561 = vmatprep.subr.mxu0 0.0
    %562 = vmatpush1.msra.mxu0 0.0
    %563 = vmatprep.subr.mxu0 0.0
    %564 = vmatpush1.msra.mxu0 0.0
    %565 = vmatprep.mubr.f32.mxu0 0.0
    %566 = vmatmul.mubr.f32.gmra.mrb[0].mxu0 %v490
    %v567 = vpop.f32.mrb[0].mxu0
    %v568 = vadd.f32 %v472, %v567
    %v569 = vpop.f32.mrb[0].mxu0
    %v570 = vadd.f32 %v472, %v569
    %571 = vmatprep.mubr.f32.mxu0 0.0
    %572 = vmatmul.mubr.f32.gmra.mrb[0].mxu0 %v493
    %v573 = vpop.f32.mrb[0].mxu0
    %v574 = vadd.f32 %v477, %v573
    %v575 = vpop.f32.mrb[0].mxu0
    %v576 = vadd.f32 %v477, %v575
    %577 = vmatprep.mubr.f32.mxu0 0.0
    %578 = vmatmul.mubr.f32.gmra.mrb[0].mxu0 %v496
    %v579 = vpop.f32.mrb[0].mxu0
    %v580 = vadd.f32 %v482, %v579
    %v581 = vpop.f32.mrb[0].mxu0
    %v582 = vadd.f32 %v482, %v581
    %583 = vmatprep.mubr.f32.mxu0 0.0
    %584 = vmatmul.mubr.f32.gmra.mrb[0].mxu0 %v499
    %v585 = vpop.f32.mrb[0].mxu0
    %v586 = vadd.f32 %v487, %v585
    %v587 = vpop.f32.mrb[0].mxu0
    %v588 = vadd.f32 %v487, %v587
    %589 = vdwg.mxu0
    %v590 = vtanh.pop %v568
    %v591 = vtanh.pop %v570
    %v592 = vtanh.pop %v574
    %v593 = vtanh.pop %v576
    %v594 = vtanh.pop %v580
    %v595 = vtanh.pop %v582
    %v596 = vtanh.pop %v586
    %v597 = vtanh.pop %v588
    %v598 = vld [vmem:[%s5] sm:$0x1]
    %v599 = vld [vmem:[#allocation2] sm:$0x1]
    %601 = vset.pattern.permute.xlu0 0
    %602 = vperm.xlu0 %601, %v599
    %v603 = vpop.permute.xlu0 %602
    %v605 = vlaneseq
    %v606 = vshrl.u32 %v605, 7
    %v607 = vsub.s32 0, %v606
    %v608 = vrot.slane %v603, %v607
    %v610 = vsel %vm210, %v598, 0
    %612 = vmatprep.subr.mxu0 %v591
    %613 = vmatpush1.msra.mxu0 %v590
    %614 = vmatprep.subr.mxu0 %v593
    %615 = vmatpush1.msra.mxu0 %v592
    %616 = vmatprep.subr.mxu0 %v595
    %617 = vmatpush1.msra.mxu0 %v594
    %618 = vmatprep.subr.mxu0 %v597
    %619 = vmatpush1.msra.mxu0 %v596
    %620 = vmatprep.subr.mxu0 0.0
    %621 = vmatpush1.msra.mxu0 0.0
    %622 = vmatprep.subr.mxu0 0.0
    %623 = vmatpush1.msra.mxu0 0.0
    %624 = vmatprep.subr.mxu0 0.0
    %625 = vmatpush1.msra.mxu0 0.0
    %626 = vmatprep.subr.mxu0 0.0
    %627 = vmatpush1.msra.mxu0 0.0
    %628 = vmatprep.subr.mxu0 0.0
    %629 = vmatpush1.msra.mxu0 0.0
    %630 = vmatprep.subr.mxu0 0.0
    %631 = vmatpush1.msra.mxu0 0.0
    %632 = vmatprep.subr.mxu0 0.0
    %633 = vmatpush1.msra.mxu0 0.0
    %634 = vmatprep.subr.mxu0 0.0
    %635 = vmatpush1.msra.mxu0 0.0
    %636 = vmatprep.subr.mxu0 0.0
    %637 = vmatpush1.msra.mxu0 0.0
    %638 = vmatprep.subr.mxu0 0.0
    %639 = vmatpush1.msra.mxu0 0.0
    %640 = vmatprep.subr.mxu0 0.0
    %641 = vmatpush1.msra.mxu0 0.0
    %642 = vmatprep.subr.mxu0 0.0
    %643 = vmatpush1.msra.mxu0 0.0
    %644 = vmatprep.subr.mxu0 0.0
    %645 = vmatpush1.msra.mxu0 0.0
    %646 = vmatprep.subr.mxu0 0.0
    %647 = vmatpush1.msra.mxu0 0.0
    %648 = vmatprep.subr.mxu0 0.0
    %649 = vmatpush1.msra.mxu0 0.0
    %650 = vmatprep.subr.mxu0 0.0
    %651 = vmatpush1.msra.mxu0 0.0
    %652 = vmatprep.subr.mxu0 0.0
    %653 = vmatpush1.msra.mxu0 0.0
    %654 = vmatprep.subr.mxu0 0.0
    %655 = vmatpush1.msra.mxu0 0.0
    %656 = vmatprep.subr.mxu0 0.0
    %657 = vmatpush1.msra.mxu0 0.0
    %658 = vmatprep.subr.mxu0 0.0
    %659 = vmatpush1.msra.mxu0 0.0
    %660 = vmatprep.subr.mxu0 0.0
    %661 = vmatpush1.msra.mxu0 0.0
    %662 = vmatprep.subr.mxu0 0.0
    %663 = vmatpush1.msra.mxu0 0.0
    %664 = vmatprep.subr.mxu0 0.0
    %665 = vmatpush1.msra.mxu0 0.0
    %666 = vmatprep.subr.mxu0 0.0
    %667 = vmatpush1.msra.mxu0 0.0
    %668 = vmatprep.subr.mxu0 0.0
    %669 = vmatpush1.msra.mxu0 0.0
    %670 = vmatprep.subr.mxu0 0.0
    %671 = vmatpush1.msra.mxu0 0.0
    %672 = vmatprep.subr.mxu0 0.0
    %673 = vmatpush1.msra.mxu0 0.0
    %674 = vmatprep.subr.mxu0 0.0
    %675 = vmatpush1.msra.mxu0 0.0
    %676 = vmatprep.mubr.f32.mxu0 0.0
    %677 = vmatmul.mubr.f32.gmra.mrb[0].mxu0 %v610
    %v678 = vpop.f32.mrb[0].mxu0
    %v679 = vadd.f32 %v608, %v678
    %v680 = vpop.f32.mrb[0].mxu0
    %v681 = vadd.f32 %v608, %v680
    %682 = vdwg.mxu0
    %v685 = vcombine.low %v679, %v681
    %v687 = vunpack.c.l.s4 1966171168
    %v688 = vunpack.c.0.s8 %v687
    %v689 = vlaneseq
    %v690 = vshrl.u32 %v689, 7
    %v691 = vsub.s32 %v688, %v690
    %v692 = vrot.slane %v685, %v691
    %v694 = vunpack.c.l.s4 1966171168
    %v695 = vunpack.c.0.s8 %v694
    %v696 = vlaneseq
    %v697 = vshrl.u32 %v696, 7
    %v698 = vsub.s32 %v695, %v697
    %v699 = vrot.slane %v692, %v698
    %v701 = vlaneseq
    %vm702 = vcmp.ge.s32.totalorder %v701, 0
    %vm703 = vcmp.lt.s32.totalorder %v701, 256
    %vm704 = vmand %vm702, %vm703
    %705 = vst.msk [vmem:[#allocation3] sm:$0x3] %vm704, %v699
    // Predicated region
    $region30: #{tpu_custom_call.1} parent=1 // pred_check
      _
    $region31: #{tpu_custom_call.1} parent=1 // pred_check_branch
      %707 = sbr.rel (0) target = $region33
    $region32: #{tpu_custom_call.1} parent=1 // pred_region
      %s709 = ssub.s32 32, 32
      %710 = vsyncadd [#allocation4], %s709
      %s712 = sshll.u32 [#allocation3], 4
      %s713 = int_to_ptr.vmem [resolvable:$true] %s712
      %715 = dma.vmem_to_hbm [thread:$0]  %s713, 32, %s7, [#allocation4]
    $region33: #{tpu_custom_call.1} parent=1 // pred_fallthru
      _
    // Predicated region
    $region34: #{tpu_custom_call.1} parent=1 // pred_check
      _
    $region35: #{tpu_custom_call.1} parent=1 // pred_check_branch
      %717 = sbr.rel (0) target = $region37
    $region36: #{tpu_custom_call.1} parent=1 // pred_region
      %718 = dma.done [#allocation4], 32
    $region37: #{tpu_custom_call.1} parent=1 // pred_fallthru
      _
    %719 = vsyncpa [#allocation4], 1

</llo_original>
